<compile_context>
chip_gen: v7x
topology: tpu7x:2x2x1
jax: 0.10.0
libtpu: 0.0.40
codegen_flags: <defaults>
</compile_context>

<pallas_src>
import math

import jax
import jax.numpy as jnp
from jax.experimental import pallas as pl
from jax.experimental.pallas import tpu as pltpu


# ---------------------------------------------------------------------------
# Kernels
# ---------------------------------------------------------------------------
def _ffn_resident_kernel(x_ref, w1_ref, b1_ref, w2_ref, b2_ref, o_ref):
    """W1/W2 fully VMEM-resident; 1-D row grid."""
    x = x_ref[...].astype(jnp.bfloat16)                      # (TM, E)

    # Linear 1 on the MXU: bf16 operands, f32 accumulation.
    h = jnp.dot(x, w1_ref[...], preferred_element_type=jnp.float32)  # (TM, F)
    h = jnp.maximum(h + b1_ref[...], 0.0)                    # bias + ReLU in f32 (VPU)

    # TODO(synk): nn.Dropout is identity at inference; training-mode dropout
    # (pltpu.prng_seed + prng_random_bits masking) is not implemented here.

    # Linear 2 on the MXU.
    y = jnp.dot(h.astype(jnp.bfloat16), w2_ref[...],
                preferred_element_type=jnp.float32)          # (TM, E)
    o_ref[...] = (y + b2_ref[...]).astype(o_ref.dtype)


def _ffn_ftiled_kernel(x_ref, w1_ref, b1_ref, w2_ref, b2_ref, o_ref, acc_ref):
    """d_ff split across a second ('arbitrary') grid axis; f32 accumulator."""
    j = pl.program_id(1)

    @pl.when(j == 0)
    def _():
        acc_ref[...] = jnp.zeros_like(acc_ref)

    x = x_ref[...].astype(jnp.bfloat16)                      # (TM, E)
    h = jnp.dot(x, w1_ref[...], preferred_element_type=jnp.float32)  # (TM, TF)
    h = jnp.maximum(h + b1_ref[...], 0.0)
    acc_ref[...] += jnp.dot(h.astype(jnp.bfloat16), w2_ref[...],
                            preferred_element_type=jnp.float32)      # (TM, E)

    @pl.when(j == pl.num_programs(1) - 1)
    def _():
        o_ref[...] = (acc_ref[...] + b2_ref[...]).astype(o_ref.dtype)


# ---------------------------------------------------------------------------
# Sizing helpers
# ---------------------------------------------------------------------------
def _round_up(a, b):
    return (a + b - 1) // b * b


def _vmem_limit_bytes():
    """~80% of the physical per-core VMEM (v5e/v6e: ~102 MiB, v7x: ~51 MiB)."""
    try:
        cap = int(pltpu.get_tpu_info().vmem_capacity_bytes)
        return int(cap * 0.8)
    except Exception:
        return 48 * 1024 * 1024  # conservative: fits every TPU generation


def _choose_f_block(E, F, budget_bytes):
    """Largest usable d_ff tile. Resident (== F) if both bf16 weights fit the
    budget single-buffered; otherwise halve F toward a 128-multiple so the
    *double-buffered* per-step W1/W2 slices fit."""
    if 4 * E * F <= budget_bytes:          # 2 weights * bf16(2B) * E * F
        return F
    tf = F
    while tf % 2 == 0 and tf > 128 and 8 * E * tf > budget_bytes:
        tf //= 2
    if tf % 128 != 0 or F % tf != 0:
        return F                           # can't tile cleanly; stay resident
    return tf


def prepare_params(params):
    """One-time parameter conversion (do NOT do this per call): bf16 weights
    for the MXU, f32 biases, weights laid out (in, out)."""
    E = params["w1"].shape[0]
    F = params["w1"].shape[1]
    return {
        "w1": jnp.asarray(params["w1"], jnp.bfloat16),
        "b1": jnp.asarray(params["b1"], jnp.float32).reshape(1, F),
        "w2": jnp.asarray(params["w2"], jnp.bfloat16),
        "b2": jnp.asarray(params["b2"], jnp.float32).reshape(1, E),
    }


# ---------------------------------------------------------------------------
# Wrapper
# ---------------------------------------------------------------------------
def positionwise_ffn(x, params, *, block_rows=512, d_ff_block=None,
                     out_dtype=None, single_buffer_weights=True):
    """x: (..., d_model). params: w1 (E,F), b1 (1,F), w2 (F,E), b2 (1,E),
    ideally pre-converted with prepare_params (bf16 weights)."""
    orig_shape = x.shape
    E = orig_shape[-1]
    F = params["w1"].shape[1]
    out_dtype = out_dtype if out_dtype is not None else x.dtype

    # No-op if params were prepared once via prepare_params().
    w1 = jnp.asarray(params["w1"], jnp.bfloat16)
    w2 = jnp.asarray(params["w2"], jnp.bfloat16)
    b1 = jnp.asarray(params["b1"], jnp.float32).reshape(1, F)
    b2 = jnp.asarray(params["b2"], jnp.float32).reshape(1, E)

    N = int(math.prod(orig_shape[:-1]))
    x2 = x.reshape(N, E)

    # Row tile: multiple of 8 sublanes; no jnp.pad — ragged last block is
    # handled by Pallas (masked writes on the partial output block).
    if N <= block_rows:
        tm = N if N % 8 == 0 else _round_up(N, 8)
    else:
        tm = block_rows
    n_row_blocks = pl.cdiv(N, tm)

    vmem_limit = _vmem_limit_bytes()
    if d_ff_block is None:
        d_ff_block = _choose_f_block(E, F, int(0.4 * vmem_limit))
    resident = d_ff_block >= F
    if not resident and F % d_ff_block != 0:
        raise ValueError(f"d_ff_block={d_ff_block} must divide d_ff={F}")

    def run(use_single_buffer):
        if resident:
            def wspec(shape):
                if use_single_buffer:
                    # Constant index_map -> one VMEM buffer is enough.
                    return pl.BlockSpec(shape, lambda i: (0, 0),
                                        pipeline_mode=pl.Buffered(1))
                return pl.BlockSpec(shape, lambda i: (0, 0))

            grid_spec = pltpu.PrefetchScalarGridSpec(
                num_scalar_prefetch=0,
                grid=(n_row_blocks,),
                in_specs=[
                    pl.BlockSpec((tm, E), lambda i: (i, 0)),   # x (pipelined)
                    wspec((E, F)),                             # W1 (resident)
                    wspec((1, F)),                             # b1
                    wspec((F, E)),                             # W2 (resident)
                    wspec((1, E)),                             # b2
                ],
                out_specs=pl.BlockSpec((tm, E), lambda i: (i, 0)),
            )
            kernel = _ffn_resident_kernel
            dims = ("parallel",)
        else:
            tf = d_ff_block
            grid_spec = pltpu.PrefetchScalarGridSpec(
                num_scalar_prefetch=0,
                grid=(n_row_blocks, F // tf),
                in_specs=[
                    pl.BlockSpec((tm, E), lambda i, j: (i, 0)),   # x
                    pl.BlockSpec((E, tf), lambda i, j: (0, j)),   # W1 slice
                    pl.BlockSpec((1, tf), lambda i, j: (0, j)),   # b1 slice
                    pl.BlockSpec((tf, E), lambda i, j: (j, 0)),   # W2 slice
                    pl.BlockSpec((1, E), lambda i, j: (0, 0)),    # b2
                ],
                out_specs=pl.BlockSpec((tm, E), lambda i, j: (i, 0)),
                scratch_shapes=[pltpu.VMEM((tm, E), jnp.float32)],
            )
            kernel = _ffn_ftiled_kernel
            dims = ("parallel", "arbitrary")

        return pl.pallas_call(
            kernel,
            out_shape=jax.ShapeDtypeStruct((N, E), out_dtype),
            grid_spec=grid_spec,
            compiler_params=pltpu.CompilerParams(
                dimension_semantics=dims,
                vmem_limit_bytes=vmem_limit),
        )(x2, w1, b1, w2, b2)

    if resident and single_buffer_weights:
        try:
            out = run(True)
        except Exception:
            # Older JAX without pipeline_mode/Buffered(1): fall back cleanly.
            out = run(False)
    else:
        out = run(False)

    return out.reshape(orig_shape)


# ---------------------------------------------------------------------------
# Reference & test
# ---------------------------------------------------------------------------
def _reference(x, params):
    """Pure-JAX f32 reference mirroring the PyTorch forward (dropout = identity)."""
    w1 = params["w1"].astype(jnp.float32)
    w2 = params["w2"].astype(jnp.float32)
    h = jnp.maximum(x @ w1 + params["b1"].reshape(-1), 0.0)
    return h @ w2 + params["b2"].reshape(-1)


def _init_params(key, d_model, d_ff):
    ks = jax.random.split(key, 4)
    return {
        # weights stored (in, out) so the kernel computes x @ W + b
        "w1": jax.random.normal(ks[0], (d_model, d_ff), jnp.float32) / math.sqrt(d_model),
        "b1": jax.random.normal(ks[1], (1, d_ff), jnp.float32) * 0.02,
        "w2": jax.random.normal(ks[2], (d_ff, d_model), jnp.float32) / math.sqrt(d_ff),
        "b2": jax.random.normal(ks[3], (1, d_model), jnp.float32) * 0.02,
    }


if __name__ == "__main__":
    key = jax.random.PRNGKey(0)
    kx1, kp1, kx2, kp2 = jax.random.split(key, 4)

    # --- Test 1: tiny module-like config (resident-weight path) ------------
    B, S, D_MODEL, D_FF = 2, 8, 32, 64
    x = jax.random.normal(kx1, (B, S, D_MODEL), jnp.float32)
    params = prepare_params(_init_params(kp1, D_MODEL, D_FF))   # bf16 cast once
    out = jax.block_until_ready(positionwise_ffn(x, params))
    ref = _reference(x, params)
    assert out.shape == (B, S, D_MODEL)
    # Tolerance covers bf16 MXU operands (f32 accumulation).
    assert jnp.allclose(out, ref, atol=5e-2, rtol=5e-2), "mismatch (resident path)"

    # --- Test 2: lane-dense config exercising the F-tiled accumulator path
    #             and a ragged last row block (N=40 rows, tm=16). -----------
    B2, S2, E2, F2 = 2, 20, 256, 512
    x2 = jax.random.normal(kx2, (B2, S2, E2), jnp.float32)
    params2 = prepare_params(_init_params(kp2, E2, F2))
    out2 = jax.block_until_ready(
        positionwise_ffn(x2, params2, block_rows=16, d_ff_block=256))
    ref2 = _reference(x2, params2)
    assert out2.shape == (B2, S2, E2)
    assert jnp.allclose(out2, ref2, atol=5e-2, rtol=5e-2), "mismatch (F-tiled path)"

    print("KERNEL_OK")
</pallas_src>

<mosaic_0001>
module attributes {stable_mosaic.version = 11 : i64} {
  func.func @_ffn_resident_kernel(%arg0: i32, %arg1: memref<16x32xf32, #tpu.memory_space<vmem>>, %arg2: memref<32x64xbf16, #tpu.memory_space<vmem>>, %arg3: memref<1x64xf32, #tpu.memory_space<vmem>>, %arg4: memref<64x32xbf16, #tpu.memory_space<vmem>>, %arg5: memref<1x32xf32, #tpu.memory_space<vmem>>, %arg6: memref<16x32xf32, #tpu.memory_space<vmem>>) attributes {dimension_semantics = [#tpu.dimension_semantics<parallel>], iteration_bounds = array<i64: 1>, scalar_prefetch = 0 : i64, scratch_operands = 0 : i64, tpu.core_type = #tpu.core_type<tc>, window_params = [{transform_indices = @transform_0, window_bounds = array<i64: 16, 32>}, {pipeline_mode = #tpu.pipeline_mode<synchronous>, transform_indices = @transform_1, window_bounds = array<i64: 32, 64>}, {pipeline_mode = #tpu.pipeline_mode<synchronous>, transform_indices = @transform_2, window_bounds = array<i64: 1, 64>}, {pipeline_mode = #tpu.pipeline_mode<synchronous>, transform_indices = @transform_3, window_bounds = array<i64: 64, 32>}, {pipeline_mode = #tpu.pipeline_mode<synchronous>, transform_indices = @transform_4, window_bounds = array<i64: 1, 32>}, {transform_indices = @transform_5, window_bounds = array<i64: 16, 32>}]} {
    %c0 = arith.constant 0 : index
    %c0_0 = arith.constant 0 : index
    %0 = vector.load %arg1[%c0, %c0_0] : memref<16x32xf32, #tpu.memory_space<vmem>>, vector<16x32xf32>
    %1 = arith.truncf %0 : vector<16x32xf32> to vector<16x32xbf16>
    %c0_1 = arith.constant 0 : index
    %c0_2 = arith.constant 0 : index
    %2 = vector.load %arg2[%c0_1, %c0_2] : memref<32x64xbf16, #tpu.memory_space<vmem>>, vector<32x64xbf16>
    %cst = arith.constant dense<0.000000e+00> : vector<16x64xf32>
    %3 = tpu.matmul %1, %2, %cst {dimension_numbers = #tpu.dot_dimension_numbers<[1], [0], [0], [1], [0, 0, 1, 1], [], []>} : vector<16x32xbf16>, vector<32x64xbf16>, vector<16x64xf32> -> vector<16x64xf32>
    %c0_3 = arith.constant 0 : index
    %c0_4 = arith.constant 0 : index
    %4 = vector.load %arg3[%c0_3, %c0_4] : memref<1x64xf32, #tpu.memory_space<vmem>>, vector<1x64xf32>
    %5 = vector.broadcast %4 : vector<1x64xf32> to vector<16x64xf32>
    %6 = arith.addf %3, %5 : vector<16x64xf32>
    %cst_5 = arith.constant 0.000000e+00 : f32
    %7 = vector.broadcast %cst_5 : f32 to vector<16x64xf32>
    %8 = arith.maximumf %6, %7 : vector<16x64xf32>
    %9 = arith.truncf %8 : vector<16x64xf32> to vector<16x64xbf16>
    %c0_6 = arith.constant 0 : index
    %c0_7 = arith.constant 0 : index
    %10 = vector.load %arg4[%c0_6, %c0_7] : memref<64x32xbf16, #tpu.memory_space<vmem>>, vector<64x32xbf16>
    %cst_8 = arith.constant dense<0.000000e+00> : vector<16x32xf32>
    %11 = tpu.matmul %9, %10, %cst_8 {dimension_numbers = #tpu.dot_dimension_numbers<[1], [0], [0], [1], [0, 0, 1, 1], [], []>} : vector<16x64xbf16>, vector<64x32xbf16>, vector<16x32xf32> -> vector<16x32xf32>
    %c0_9 = arith.constant 0 : index
    %c0_10 = arith.constant 0 : index
    %12 = vector.load %arg5[%c0_9, %c0_10] : memref<1x32xf32, #tpu.memory_space<vmem>>, vector<1x32xf32>
    %13 = vector.broadcast %12 : vector<1x32xf32> to vector<16x32xf32>
    %14 = arith.addf %11, %13 : vector<16x32xf32>
    %c0_11 = arith.constant 0 : index
    %c0_12 = arith.constant 0 : index
    %15 = vector.load %arg6[%c0_11, %c0_12] : memref<16x32xf32, #tpu.memory_space<vmem>>, vector<16x32xf32>
    tpu.vector_store %arg6[%c0_11, %c0_12], %14 {strides = array<i32>} : memref<16x32xf32, #tpu.memory_space<vmem>>, vector<16x32xf32>,
    return
  }
  func.func @transform_0(%arg0: i32) -> (i32, i32) {
    %c0_i32 = arith.constant 0 : i32
    %c0_i32_0 = arith.constant 0 : i32
    return %arg0, %c0_i32 : i32, i32
  }
  func.func @transform_1(%arg0: i32) -> (i32, i32) {
    %c0_i32 = arith.constant 0 : i32
    %c0_i32_0 = arith.constant 0 : i32
    %c0_i32_1 = arith.constant 0 : i32
    return %c0_i32, %c0_i32_0 : i32, i32
  }
  func.func @transform_2(%arg0: i32) -> (i32, i32) {
    %c0_i32 = arith.constant 0 : i32
    %c0_i32_0 = arith.constant 0 : i32
    %c0_i32_1 = arith.constant 0 : i32
    return %c0_i32, %c0_i32_0 : i32, i32
  }
  func.func @transform_3(%arg0: i32) -> (i32, i32) {
    %c0_i32 = arith.constant 0 : i32
    %c0_i32_0 = arith.constant 0 : i32
    %c0_i32_1 = arith.constant 0 : i32
    return %c0_i32, %c0_i32_0 : i32, i32
  }
  func.func @transform_4(%arg0: i32) -> (i32, i32) {
    %c0_i32 = arith.constant 0 : i32
    %c0_i32_0 = arith.constant 0 : i32
    %c0_i32_1 = arith.constant 0 : i32
    return %c0_i32, %c0_i32_0 : i32, i32
  }
  func.func @transform_5(%arg0: i32) -> (i32, i32) {
    %c0_i32 = arith.constant 0 : i32
    %c0_i32_0 = arith.constant 0 : i32
    return %arg0, %c0_i32 : i32, i32
  }
}

module attributes {stable_mosaic.version = 11 : i64} {
  func.func @_ffn_resident_kernel(%arg0: i32, %arg1: memref<16x32xf32, #tpu.memory_space<vmem>>, %arg2: memref<32x64xbf16, #tpu.memory_space<vmem>>, %arg3: memref<1x64xf32, #tpu.memory_space<vmem>>, %arg4: memref<64x32xbf16, #tpu.memory_space<vmem>>, %arg5: memref<1x32xf32, #tpu.memory_space<vmem>>, %arg6: memref<16x32xf32, #tpu.memory_space<vmem>>) attributes {dimension_semantics = [#tpu.dimension_semantics<parallel>], iteration_bounds = array<i64: 1>, scalar_prefetch = 0 : i64, scratch_operands = 0 : i64, tpu.core_type = #tpu.core_type<tc>, window_params = [{transform_indices = @transform_0, window_bounds = array<i64: 16, 32>}, {pipeline_mode = #tpu.pipeline_mode<synchronous>, transform_indices = @transform_1, window_bounds = array<i64: 32, 64>}, {pipeline_mode = #tpu.pipeline_mode<synchronous>, transform_indices = @transform_2, window_bounds = array<i64: 1, 64>}, {pipeline_mode = #tpu.pipeline_mode<synchronous>, transform_indices = @transform_3, window_bounds = array<i64: 64, 32>}, {pipeline_mode = #tpu.pipeline_mode<synchronous>, transform_indices = @transform_4, window_bounds = array<i64: 1, 32>}, {transform_indices = @transform_5, window_bounds = array<i64: 16, 32>}]} {
    %c0 = arith.constant 0 : index
    %c0_0 = arith.constant 0 : index
    %0 = vector.load %arg1[%c0, %c0_0] : memref<16x32xf32, #tpu.memory_space<vmem>>, vector<16x32xf32>
    %1 = arith.truncf %0 : vector<16x32xf32> to vector<16x32xbf16>
    %c0_1 = arith.constant 0 : index
    %c0_2 = arith.constant 0 : index
    %2 = vector.load %arg2[%c0_1, %c0_2] : memref<32x64xbf16, #tpu.memory_space<vmem>>, vector<32x64xbf16>
    %cst = arith.constant dense<0.000000e+00> : vector<16x64xf32>
    %3 = tpu.matmul %1, %2, %cst {dimension_numbers = #tpu.dot_dimension_numbers<[1], [0], [0], [1], [0, 0, 1, 1], [], []>} : vector<16x32xbf16>, vector<32x64xbf16>, vector<16x64xf32> -> vector<16x64xf32>
    %c0_3 = arith.constant 0 : index
    %c0_4 = arith.constant 0 : index
    %4 = vector.load %arg3[%c0_3, %c0_4] : memref<1x64xf32, #tpu.memory_space<vmem>>, vector<1x64xf32>
    %5 = vector.broadcast %4 : vector<1x64xf32> to vector<16x64xf32>
    %6 = arith.addf %3, %5 : vector<16x64xf32>
    %cst_5 = arith.constant 0.000000e+00 : f32
    %7 = vector.broadcast %cst_5 : f32 to vector<16x64xf32>
    %8 = arith.maximumf %6, %7 : vector<16x64xf32>
    %9 = arith.truncf %8 : vector<16x64xf32> to vector<16x64xbf16>
    %c0_6 = arith.constant 0 : index
    %c0_7 = arith.constant 0 : index
    %10 = vector.load %arg4[%c0_6, %c0_7] : memref<64x32xbf16, #tpu.memory_space<vmem>>, vector<64x32xbf16>
    %cst_8 = arith.constant dense<0.000000e+00> : vector<16x32xf32>
    %11 = tpu.matmul %9, %10, %cst_8 {dimension_numbers = #tpu.dot_dimension_numbers<[1], [0], [0], [1], [0, 0, 1, 1], [], []>} : vector<16x64xbf16>, vector<64x32xbf16>, vector<16x32xf32> -> vector<16x32xf32>
    %c0_9 = arith.constant 0 : index
    %c0_10 = arith.constant 0 : index
    %12 = vector.load %arg5[%c0_9, %c0_10] : memref<1x32xf32, #tpu.memory_space<vmem>>, vector<1x32xf32>
    %13 = vector.broadcast %12 : vector<1x32xf32> to vector<16x32xf32>
    %14 = arith.addf %11, %13 : vector<16x32xf32>
    %c0_11 = arith.constant 0 : index
    %c0_12 = arith.constant 0 : index
    %15 = vector.load %arg6[%c0_11, %c0_12] : memref<16x32xf32, #tpu.memory_space<vmem>>, vector<16x32xf32>
    tpu.vector_store %arg6[%c0_11, %c0_12], %14 {strides = array<i32>} : memref<16x32xf32, #tpu.memory_space<vmem>>, vector<16x32xf32>,
    return
  }
  func.func @transform_0(%arg0: i32) -> (i32, i32) {
    %c0_i32 = arith.constant 0 : i32
    %c0_i32_0 = arith.constant 0 : i32
    return %arg0, %c0_i32 : i32, i32
  }
  func.func @transform_1(%arg0: i32) -> (i32, i32) {
    %c0_i32 = arith.constant 0 : i32
    %c0_i32_0 = arith.constant 0 : i32
    %c0_i32_1 = arith.constant 0 : i32
    return %c0_i32, %c0_i32_0 : i32, i32
  }
  func.func @transform_2(%arg0: i32) -> (i32, i32) {
    %c0_i32 = arith.constant 0 : i32
    %c0_i32_0 = arith.constant 0 : i32
    %c0_i32_1 = arith.constant 0 : i32
    return %c0_i32, %c0_i32_0 : i32, i32
  }
  func.func @transform_3(%arg0: i32) -> (i32, i32) {
    %c0_i32 = arith.constant 0 : i32
    %c0_i32_0 = arith.constant 0 : i32
    %c0_i32_1 = arith.constant 0 : i32
    return %c0_i32, %c0_i32_0 : i32, i32
  }
  func.func @transform_4(%arg0: i32) -> (i32, i32) {
    %c0_i32 = arith.constant 0 : i32
    %c0_i32_0 = arith.constant 0 : i32
    %c0_i32_1 = arith.constant 0 : i32
    return %c0_i32, %c0_i32_0 : i32, i32
  }
  func.func @transform_5(%arg0: i32) -> (i32, i32) {
    %c0_i32 = arith.constant 0 : i32
    %c0_i32_0 = arith.constant 0 : i32
    return %arg0, %c0_i32 : i32, i32
  }
}

</mosaic_0001>

<llo_original>
// kernel: tpu_custom_call.1
$region0: #{tpu_custom_call.1}
  #allocation0 [shape = 'u32[]', space=smem, size = 0x4, offset = 0x4, fixed_abs, tag = 'smem constant byte address 0x4 - core index']
  #allocation1 [shape = 'u32[144,128]{1,0:T(1,128)}', space=vmem, size = 0x12000, scoped, tag = 'internal scratch']
  %s0 = inlined_call_operand.vmem [shape: f32[16,32], index: 0, kind: input, shape index: {}]
  %s1 = inlined_call_operand.vmem [shape: bf16[32,64], index: 1, kind: input, shape index: {}]
  %s2 = inlined_call_operand.vmem [shape: f32[1,64], index: 2, kind: input, shape index: {}]
  %s3 = inlined_call_operand.vmem [shape: bf16[64,32], index: 3, kind: input, shape index: {}]
  %s4 = inlined_call_operand.vmem [shape: f32[1,32], index: 4, kind: input, shape index: {}]
  %s5 = inlined_call_operand.hbm [shape: f32[16,32], index: 5, kind: output, shape index: {}]
  %s6 = sld [smem:[#allocation0]]
  $region30: #{tpu_custom_call.1} parent=0
    _
  %s8 = ssub.s32 1, %s6
  %s9 = scalar_select 0, %s8, %s6
  $region1: #{tpu_custom_call.1} parent=0
    #allocation2 [shape = 'u8[8192]{0}', space=vmem, size = 0x2000, scoped, tag = 'output window, operand 0, single buffered']
    #allocation3 [shape = 's32[1]{0}', space=sflag, size = 0x4, scoped, tag = 'scoped memory for tpu_custom_call.1']
    %10 = vsyncpa [#allocation3], 0
    // Predicated region
    $region2: #{tpu_custom_call.1} parent=1 // pred_check
      _
    $region3: #{tpu_custom_call.1} parent=1 // pred_check_branch
      %12 = sbr.rel (0) target = $region5
    $region4: #{tpu_custom_call.1} parent=1 // pred_region
      _
    $region5: #{tpu_custom_call.1} parent=1 // pred_fallthru
      _
    // Predicated region
    $region6: #{tpu_custom_call.1} parent=1 // pred_check
      _
    $region7: #{tpu_custom_call.1} parent=1 // pred_check_branch
      %14 = sbr.rel (0) target = $region9
    $region8: #{tpu_custom_call.1} parent=1 // pred_region
      _
    $region9: #{tpu_custom_call.1} parent=1 // pred_fallthru
      _
    // Predicated region
    $region10: #{tpu_custom_call.1} parent=1 // pred_check
      _
    $region11: #{tpu_custom_call.1} parent=1 // pred_check_branch
      %16 = sbr.rel (0) target = $region13
    $region12: #{tpu_custom_call.1} parent=1 // pred_region
      _
    $region13: #{tpu_custom_call.1} parent=1 // pred_fallthru
      _
    // Predicated region
    $region14: #{tpu_custom_call.1} parent=1 // pred_check
      _
    $region15: #{tpu_custom_call.1} parent=1 // pred_check_branch
      %18 = sbr.rel (0) target = $region17
    $region16: #{tpu_custom_call.1} parent=1 // pred_region
      _
    $region17: #{tpu_custom_call.1} parent=1 // pred_fallthru
      _
    // Predicated region
    $region18: #{tpu_custom_call.1} parent=1 // pred_check
      _
    $region19: #{tpu_custom_call.1} parent=1 // pred_check_branch
      %20 = sbr.rel (0) target = $region21
    $region20: #{tpu_custom_call.1} parent=1 // pred_region
      _
    $region21: #{tpu_custom_call.1} parent=1 // pred_fallthru
      _
    %v22 = vld [vmem:[%s0] sm:$0xff]
    %v23 = vld [vmem:[%s0 + $0x8] sm:$0xff]
    %v24 = vpack.c.bf16 %v23, %v22
    %v25 = vld [vmem:[%s1] sm:$0xf]
    %v26 = vld [vmem:[%s1 + $0x4] sm:$0xf]
    %v27 = vld [vmem:[%s1 + $0x8] sm:$0xf]
    %v28 = vld [vmem:[%s1 + $0xc] sm:$0xf]
    %v29 = vld [vmem:[%s2] sm:$0x1]
    %v31 = vlaneseq
    %v32 = vshrl.u32 %v31, 7
    %v33 = vsub.s32 0, %v32
    %v34 = vrot.slane %v29, %v33
    %v40 = vunpack.c.l.b16 %v25
    %v41 = vunpack.c.l.b16 %v26
    %v42 = vunpack.c.l.b16 %v27
    %v43 = vunpack.c.l.b16 %v28
    %v44 = vpack.c.b16 %v41, %v40
    %v45 = vpack.c.b16 %v43, %v42
    %vm48 = vcmask 261120
    %v50 = vsel %vm48, %v24, 0
    %52 = vmatprep.subr.bf16.mxu0 0
    %53 = vmatpush1.bf16.msra.mxu0 %v44
    %54 = vmatprep.subr.bf16.mxu0 0
    %55 = vmatpush1.bf16.msra.mxu0 %v45
    %56 = vmatprep.subr.bf16.mxu0 0
    %57 = vmatpush1.bf16.msra.mxu0 0
    %58 = vmatprep.subr.bf16.mxu0 0
    %59 = vmatpush1.bf16.msra.mxu0 0
    %60 = vmatprep.subr.bf16.mxu0 0
    %61 = vmatpush1.bf16.msra.mxu0 0
    %62 = vmatprep.subr.bf16.mxu0 0
    %63 = vmatpush1.bf16.msra.mxu0 0
    %64 = vmatprep.subr.bf16.mxu0 0
    %65 = vmatpush1.bf16.msra.mxu0 0
    %66 = vmatprep.subr.bf16.mxu0 0
    %67 = vmatpush1.bf16.msra.mxu0 0
    %68 = vmatprep.subr.bf16.mxu0 0
    %69 = vmatpush1.bf16.msra.mxu0 0
    %70 = vmatprep.subr.bf16.mxu0 0
    %71 = vmatpush1.bf16.msra.mxu0 0
    %72 = vmatprep.subr.bf16.mxu0 0
    %73 = vmatpush1.bf16.msra.mxu0 0
    %74 = vmatprep.subr.bf16.mxu0 0
    %75 = vmatpush1.bf16.msra.mxu0 0
    %76 = vmatprep.subr.bf16.mxu0 0
    %77 = vmatpush1.bf16.msra.mxu0 0
    %78 = vmatprep.subr.bf16.mxu0 0
    %79 = vmatpush1.bf16.msra.mxu0 0
    %80 = vmatprep.subr.bf16.mxu0 0
    %81 = vmatpush1.bf16.msra.mxu0 0
    %82 = vmatprep.subr.bf16.mxu0 0
    %83 = vmatpush1.bf16.msra.mxu0 0
    %84 = vmatprep.mubr.bf16.mxu0 0
    %85 = vmatmul.mubr.bf16.gmra.mrb[0].mxu0 %v50
    %v86 = vpop.f32.mrb[0].mxu0
    %v87 = vadd.f32 %v34, %v86
    %v88 = vpop.f32.mrb[0].mxu0
    %v89 = vpop.f32.mrb[0].mxu0
    %v90 = vadd.f32 %v34, %v89
    %v91 = vpop.f32.mrb[0].mxu0
    %92 = vdwg.mxu0
    %v93 = vmax.f32 %v87, 0.0
    %v94 = vmax.f32 %v90, 0.0
    %v95 = vpack.c.bf16 %v94, %v93
    %v96 = vld [vmem:[%s3] sm:$0xf]
    %v97 = vld [vmem:[%s3 + $0x4] sm:$0xf]
    %v98 = vld [vmem:[%s3 + $0x8] sm:$0xf]
    %v99 = vld [vmem:[%s3 + $0xc] sm:$0xf]
    %v100 = vld [vmem:[%s3 + $0x10] sm:$0xf]
    %v101 = vld [vmem:[%s3 + $0x14] sm:$0xf]
    %v102 = vld [vmem:[%s3 + $0x18] sm:$0xf]
    %v103 = vld [vmem:[%s3 + $0x1c] sm:$0xf]
    %v104 = vld [vmem:[%s4] sm:$0x1]
    %v106 = vlaneseq
    %v107 = vshrl.u32 %v106, 7
    %v108 = vsub.s32 0, %v107
    %v109 = vrot.slane %v104, %v108
    %v119 = vunpack.c.l.b16 %v96
    %v120 = vunpack.c.l.b16 %v97
    %v121 = vunpack.c.l.b16 %v98
    %v122 = vunpack.c.l.b16 %v99
    %v123 = vunpack.c.l.b16 %v100
    %v124 = vunpack.c.l.b16 %v101
    %v125 = vunpack.c.l.b16 %v102
    %v126 = vunpack.c.l.b16 %v103
    %v127 = vpack.c.b16 %v120, %v119
    %v128 = vpack.c.b16 %v122, %v121
    %v129 = vpack.c.b16 %v124, %v123
    %v130 = vpack.c.b16 %v126, %v125
    %vm135 = vcmask 523264
    %v137 = vsel %vm135, %v95, 0
    %139 = vmatprep.subr.bf16.mxu0 0
    %140 = vmatpush1.bf16.msra.mxu0 %v127
    %141 = vmatprep.subr.bf16.mxu0 0
    %142 = vmatpush1.bf16.msra.mxu0 %v128
    %143 = vmatprep.subr.bf16.mxu0 0
    %144 = vmatpush1.bf16.msra.mxu0 %v129
    %145 = vmatprep.subr.bf16.mxu0 0
    %146 = vmatpush1.bf16.msra.mxu0 %v130
    %147 = vmatprep.subr.bf16.mxu0 0
    %148 = vmatpush1.bf16.msra.mxu0 0
    %149 = vmatprep.subr.bf16.mxu0 0
    %150 = vmatpush1.bf16.msra.mxu0 0
    %151 = vmatprep.subr.bf16.mxu0 0
    %152 = vmatpush1.bf16.msra.mxu0 0
    %153 = vmatprep.subr.bf16.mxu0 0
    %154 = vmatpush1.bf16.msra.mxu0 0
    %155 = vmatprep.subr.bf16.mxu0 0
    %156 = vmatpush1.bf16.msra.mxu0 0
    %157 = vmatprep.subr.bf16.mxu0 0
    %158 = vmatpush1.bf16.msra.mxu0 0
    %159 = vmatprep.subr.bf16.mxu0 0
    %160 = vmatpush1.bf16.msra.mxu0 0
    %161 = vmatprep.subr.bf16.mxu0 0
    %162 = vmatpush1.bf16.msra.mxu0 0
    %163 = vmatprep.subr.bf16.mxu0 0
    %164 = vmatpush1.bf16.msra.mxu0 0
    %165 = vmatprep.subr.bf16.mxu0 0
    %166 = vmatpush1.bf16.msra.mxu0 0
    %167 = vmatprep.subr.bf16.mxu0 0
    %168 = vmatpush1.bf16.msra.mxu0 0
    %169 = vmatprep.subr.bf16.mxu0 0
    %170 = vmatpush1.bf16.msra.mxu0 0
    %171 = vmatprep.mubr.bf16.mxu0 0
    %172 = vmatmul.mubr.bf16.gmra.mrb[0].mxu0 %v137
    %v173 = vpop.f32.mrb[0].mxu0
    %v174 = vadd.f32 %v109, %v173
    %v175 = vpop.f32.mrb[0].mxu0
    %v176 = vpop.f32.mrb[0].mxu0
    %v177 = vadd.f32 %v109, %v176
    %v178 = vpop.f32.mrb[0].mxu0
    %179 = vdwg.mxu0
    %180 = vst.msk [vmem:[#allocation2] sm:$0xff] %vm48, %v174
    %181 = vst.msk [vmem:[#allocation2 + $0x8] sm:$0xff] %vm48, %v177
    // Predicated region
    $region22: #{tpu_custom_call.1} parent=1 // pred_check
      _
    $region23: #{tpu_custom_call.1} parent=1 // pred_check_branch
      %183 = sbr.rel (0) target = $region25
    $region24: #{tpu_custom_call.1} parent=1 // pred_region
      %s185 = ssub.s32 256, 256
      %186 = vsyncadd [#allocation3], %s185
      %s187 = sshll.u32 [#allocation2], 4
      %s188 = int_to_ptr.vmem [resolvable:$true] %s187
      %193 = dma.vmem_to_hbm [thread:$0]  %s188, 256, %s5, [#allocation3], 128, 128, 8
    $region25: #{tpu_custom_call.1} parent=1 // pred_fallthru
      _
    // Predicated region
    $region26: #{tpu_custom_call.1} parent=1 // pred_check
      _
    $region27: #{tpu_custom_call.1} parent=1 // pred_check_branch
      %195 = sbr.rel (0) target = $region29
    $region28: #{tpu_custom_call.1} parent=1 // pred_region
      %196 = dma.done [#allocation3], 256
    $region29: #{tpu_custom_call.1} parent=1 // pred_fallthru
      _
    %197 = vsyncpa [#allocation3], 1

// kernel: tpu_custom_call.1
$region0: #{tpu_custom_call.1}
  #allocation0 [shape = 'u32[]', space=smem, size = 0x4, offset = 0x4, fixed_abs, tag = 'smem constant byte address 0x4 - core index']
  #allocation1 [shape = 'u32[144,128]{1,0:T(1,128)}', space=vmem, size = 0x12000, scoped, tag = 'internal scratch']
  %s0 = inlined_call_operand.vmem [shape: f32[16,32], index: 0, kind: input, shape index: {}]
  %s1 = inlined_call_operand.vmem [shape: bf16[32,64], index: 1, kind: input, shape index: {}]
  %s2 = inlined_call_operand.vmem [shape: f32[1,64], index: 2, kind: input, shape index: {}]
  %s3 = inlined_call_operand.vmem [shape: bf16[64,32], index: 3, kind: input, shape index: {}]
  %s4 = inlined_call_operand.vmem [shape: f32[1,32], index: 4, kind: input, shape index: {}]
  %s5 = inlined_call_operand.hbm [shape: f32[16,32], index: 5, kind: output, shape index: {}]
  %s6 = sld [smem:[#allocation0]]
  $region30: #{tpu_custom_call.1} parent=0
    _
  %s8 = ssub.s32 1, %s6
  %s9 = scalar_select 0, %s8, %s6
  $region1: #{tpu_custom_call.1} parent=0
    #allocation2 [shape = 'u8[8192]{0}', space=vmem, size = 0x2000, scoped, tag = 'output window, operand 0, single buffered']
    #allocation3 [shape = 's32[1]{0}', space=sflag, size = 0x4, scoped, tag = 'scoped memory for tpu_custom_call.1']
    %10 = vsyncpa [#allocation3], 0
    // Predicated region
    $region2: #{tpu_custom_call.1} parent=1 // pred_check
      _
    $region3: #{tpu_custom_call.1} parent=1 // pred_check_branch
      %12 = sbr.rel (0) target = $region5
    $region4: #{tpu_custom_call.1} parent=1 // pred_region
      _
    $region5: #{tpu_custom_call.1} parent=1 // pred_fallthru
      _
    // Predicated region
    $region6: #{tpu_custom_call.1} parent=1 // pred_check
      _
    $region7: #{tpu_custom_call.1} parent=1 // pred_check_branch
      %14 = sbr.rel (0) target = $region9
    $region8: #{tpu_custom_call.1} parent=1 // pred_region
      _
    $region9: #{tpu_custom_call.1} parent=1 // pred_fallthru
      _
    // Predicated region
    $region10: #{tpu_custom_call.1} parent=1 // pred_check
      _
    $region11: #{tpu_custom_call.1} parent=1 // pred_check_branch
      %16 = sbr.rel (0) target = $region13
    $region12: #{tpu_custom_call.1} parent=1 // pred_region
      _
    $region13: #{tpu_custom_call.1} parent=1 // pred_fallthru
      _
    // Predicated region
    $region14: #{tpu_custom_call.1} parent=1 // pred_check
      _
    $region15: #{tpu_custom_call.1} parent=1 // pred_check_branch
      %18 = sbr.rel (0) target = $region17
    $region16: #{tpu_custom_call.1} parent=1 // pred_region
      _
    $region17: #{tpu_custom_call.1} parent=1 // pred_fallthru
      _
    // Predicated region
    $region18: #{tpu_custom_call.1} parent=1 // pred_check
      _
    $region19: #{tpu_custom_call.1} parent=1 // pred_check_branch
      %20 = sbr.rel (0) target = $region21
    $region20: #{tpu_custom_call.1} parent=1 // pred_region
      _
    $region21: #{tpu_custom_call.1} parent=1 // pred_fallthru
      _
    %v22 = vld [vmem:[%s0] sm:$0xff]
    %v23 = vld [vmem:[%s0 + $0x8] sm:$0xff]
    %v24 = vpack.c.bf16 %v23, %v22
    %v25 = vld [vmem:[%s1] sm:$0xf]
    %v26 = vld [vmem:[%s1 + $0x4] sm:$0xf]
    %v27 = vld [vmem:[%s1 + $0x8] sm:$0xf]
    %v28 = vld [vmem:[%s1 + $0xc] sm:$0xf]
    %v29 = vld [vmem:[%s2] sm:$0x1]
    %v31 = vlaneseq
    %v32 = vshrl.u32 %v31, 7
    %v33 = vsub.s32 0, %v32
    %v34 = vrot.slane %v29, %v33
    %v40 = vunpack.c.l.b16 %v25
    %v41 = vunpack.c.l.b16 %v26
    %v42 = vunpack.c.l.b16 %v27
    %v43 = vunpack.c.l.b16 %v28
    %v44 = vpack.c.b16 %v41, %v40
    %v45 = vpack.c.b16 %v43, %v42
    %vm48 = vcmask 261120
    %v50 = vsel %vm48, %v24, 0
    %52 = vmatprep.subr.bf16.mxu0 0
    %53 = vmatpush1.bf16.msra.mxu0 %v44
    %54 = vmatprep.subr.bf16.mxu0 0
    %55 = vmatpush1.bf16.msra.mxu0 %v45
    %56 = vmatprep.subr.bf16.mxu0 0
    %57 = vmatpush1.bf16.msra.mxu0 0
    %58 = vmatprep.subr.bf16.mxu0 0
    %59 = vmatpush1.bf16.msra.mxu0 0
    %60 = vmatprep.subr.bf16.mxu0 0
    %61 = vmatpush1.bf16.msra.mxu0 0
    %62 = vmatprep.subr.bf16.mxu0 0
    %63 = vmatpush1.bf16.msra.mxu0 0
    %64 = vmatprep.subr.bf16.mxu0 0
    %65 = vmatpush1.bf16.msra.mxu0 0
    %66 = vmatprep.subr.bf16.mxu0 0
    %67 = vmatpush1.bf16.msra.mxu0 0
    %68 = vmatprep.subr.bf16.mxu0 0
    %69 = vmatpush1.bf16.msra.mxu0 0
    %70 = vmatprep.subr.bf16.mxu0 0
    %71 = vmatpush1.bf16.msra.mxu0 0
    %72 = vmatprep.subr.bf16.mxu0 0
    %73 = vmatpush1.bf16.msra.mxu0 0
    %74 = vmatprep.subr.bf16.mxu0 0
    %75 = vmatpush1.bf16.msra.mxu0 0
    %76 = vmatprep.subr.bf16.mxu0 0
    %77 = vmatpush1.bf16.msra.mxu0 0
    %78 = vmatprep.subr.bf16.mxu0 0
    %79 = vmatpush1.bf16.msra.mxu0 0
    %80 = vmatprep.subr.bf16.mxu0 0
    %81 = vmatpush1.bf16.msra.mxu0 0
    %82 = vmatprep.subr.bf16.mxu0 0
    %83 = vmatpush1.bf16.msra.mxu0 0
    %84 = vmatprep.mubr.bf16.mxu0 0
    %85 = vmatmul.mubr.bf16.gmra.mrb[0].mxu0 %v50
    %v86 = vpop.f32.mrb[0].mxu0
    %v87 = vadd.f32 %v34, %v86
    %v88 = vpop.f32.mrb[0].mxu0
    %v89 = vpop.f32.mrb[0].mxu0
    %v90 = vadd.f32 %v34, %v89
    %v91 = vpop.f32.mrb[0].mxu0
    %92 = vdwg.mxu0
    %v93 = vmax.f32 %v87, 0.0
    %v94 = vmax.f32 %v90, 0.0
    %v95 = vpack.c.bf16 %v94, %v93
    %v96 = vld [vmem:[%s3] sm:$0xf]
    %v97 = vld [vmem:[%s3 + $0x4] sm:$0xf]
    %v98 = vld [vmem:[%s3 + $0x8] sm:$0xf]
    %v99 = vld [vmem:[%s3 + $0xc] sm:$0xf]
    %v100 = vld [vmem:[%s3 + $0x10] sm:$0xf]
    %v101 = vld [vmem:[%s3 + $0x14] sm:$0xf]
    %v102 = vld [vmem:[%s3 + $0x18] sm:$0xf]
    %v103 = vld [vmem:[%s3 + $0x1c] sm:$0xf]
    %v104 = vld [vmem:[%s4] sm:$0x1]
    %v106 = vlaneseq
    %v107 = vshrl.u32 %v106, 7
    %v108 = vsub.s32 0, %v107
    %v109 = vrot.slane %v104, %v108
    %v119 = vunpack.c.l.b16 %v96
    %v120 = vunpack.c.l.b16 %v97
    %v121 = vunpack.c.l.b16 %v98
    %v122 = vunpack.c.l.b16 %v99
    %v123 = vunpack.c.l.b16 %v100
    %v124 = vunpack.c.l.b16 %v101
    %v125 = vunpack.c.l.b16 %v102
    %v126 = vunpack.c.l.b16 %v103
    %v127 = vpack.c.b16 %v120, %v119
    %v128 = vpack.c.b16 %v122, %v121
    %v129 = vpack.c.b16 %v124, %v123
    %v130 = vpack.c.b16 %v126, %v125
    %vm135 = vcmask 523264
    %v137 = vsel %vm135, %v95, 0
    %139 = vmatprep.subr.bf16.mxu0 0
    %140 = vmatpush1.bf16.msra.mxu0 %v127
    %141 = vmatprep.subr.bf16.mxu0 0
    %142 = vmatpush1.bf16.msra.mxu0 %v128
    %143 = vmatprep.subr.bf16.mxu0 0
    %144 = vmatpush1.bf16.msra.mxu0 %v129
    %145 = vmatprep.subr.bf16.mxu0 0
    %146 = vmatpush1.bf16.msra.mxu0 %v130
    %147 = vmatprep.subr.bf16.mxu0 0
    %148 = vmatpush1.bf16.msra.mxu0 0
    %149 = vmatprep.subr.bf16.mxu0 0
    %150 = vmatpush1.bf16.msra.mxu0 0
    %151 = vmatprep.subr.bf16.mxu0 0
    %152 = vmatpush1.bf16.msra.mxu0 0
    %153 = vmatprep.subr.bf16.mxu0 0
    %154 = vmatpush1.bf16.msra.mxu0 0
    %155 = vmatprep.subr.bf16.mxu0 0
    %156 = vmatpush1.bf16.msra.mxu0 0
    %157 = vmatprep.subr.bf16.mxu0 0
    %158 = vmatpush1.bf16.msra.mxu0 0
    %159 = vmatprep.subr.bf16.mxu0 0
    %160 = vmatpush1.bf16.msra.mxu0 0
    %161 = vmatprep.subr.bf16.mxu0 0
    %162 = vmatpush1.bf16.msra.mxu0 0
    %163 = vmatprep.subr.bf16.mxu0 0
    %164 = vmatpush1.bf16.msra.mxu0 0
    %165 = vmatprep.subr.bf16.mxu0 0
    %166 = vmatpush1.bf16.msra.mxu0 0
    %167 = vmatprep.subr.bf16.mxu0 0
    %168 = vmatpush1.bf16.msra.mxu0 0
    %169 = vmatprep.subr.bf16.mxu0 0
    %170 = vmatpush1.bf16.msra.mxu0 0
    %171 = vmatprep.mubr.bf16.mxu0 0
    %172 = vmatmul.mubr.bf16.gmra.mrb[0].mxu0 %v137
    %v173 = vpop.f32.mrb[0].mxu0
    %v174 = vadd.f32 %v109, %v173
    %v175 = vpop.f32.mrb[0].mxu0
    %v176 = vpop.f32.mrb[0].mxu0
    %v177 = vadd.f32 %v109, %v176
    %v178 = vpop.f32.mrb[0].mxu0
    %179 = vdwg.mxu0
    %180 = vst.msk [vmem:[#allocation2] sm:$0xff] %vm48, %v174
    %181 = vst.msk [vmem:[#allocation2 + $0x8] sm:$0xff] %vm48, %v177
    // Predicated region
    $region22: #{tpu_custom_call.1} parent=1 // pred_check
      _
    $region23: #{tpu_custom_call.1} parent=1 // pred_check_branch
      %183 = sbr.rel (0) target = $region25
    $region24: #{tpu_custom_call.1} parent=1 // pred_region
      %s185 = ssub.s32 256, 256
      %186 = vsyncadd [#allocation3], %s185
      %s187 = sshll.u32 [#allocation2], 4
      %s188 = int_to_ptr.vmem [resolvable:$true] %s187
      %193 = dma.vmem_to_hbm [thread:$0]  %s188, 256, %s5, [#allocation3], 128, 128, 8
    $region25: #{tpu_custom_call.1} parent=1 // pred_fallthru
      _
    // Predicated region
    $region26: #{tpu_custom_call.1} parent=1 // pred_check
      _
    $region27: #{tpu_custom_call.1} parent=1 // pred_check_branch
      %195 = sbr.rel (0) target = $region29
    $region28: #{tpu_custom_call.1} parent=1 // pred_region
      %196 = dma.done [#allocation3], 256
    $region29: #{tpu_custom_call.1} parent=1 // pred_fallthru
      _
    %197 = vsyncpa [#allocation3], 1

</llo_original>
